<compile_context>
chip_gen: v7x
topology: tpu7x:2x2x1
jax: 0.10.0
libtpu: 0.0.40
codegen_flags: <defaults>
</compile_context>

<pallas_src>
import functools

import jax
import jax.numpy as jnp
import numpy as np
from jax import lax
from jax.experimental import pallas as pl
from jax.experimental.pallas import tpu as pltpu


def _sliding_max(a, window, axis):
    """Max over a length-`window`, stride-1 sliding window along `axis`.

    Shift-doubling: ceil(log2(window)) (+1) maxima instead of window-1.
    Input length n -> output length n - window + 1.
    """
    n = a.shape[axis]
    out_len = n - window + 1
    cur, w = a, 1
    while 2 * w <= window:
        m = cur.shape[axis]
        cur = jnp.maximum(lax.slice_in_dim(cur, 0, m - w, axis=axis),
                          lax.slice_in_dim(cur, w, m, axis=axis))
        w *= 2
    if w < window:
        rem = window - w
        cur = jnp.maximum(lax.slice_in_dim(cur, 0, out_len, axis=axis),
                          lax.slice_in_dim(cur, rem, rem + out_len, axis=axis))
    else:
        cur = lax.slice_in_dim(cur, 0, out_len, axis=axis)
    return cur


def _block_mask_kernel(sal_ref, mask_ref, *, block_size, threshold, H, W):
    # sal_ref : (1, Hp, Wp) saliency pre-padded with a value >= threshold
    #           (thresholds to 0 == -inf padding of the {0,1} mask).
    # mask_ref: (1, H, W) block mask, in the activation dtype (exact: {0,1}).
    padded = (sal_ref[0] < threshold).astype(jnp.float32)      # (Hp, Wp)
    rowmax = _sliding_max(padded, block_size, axis=0)          # (H_out, Wp)
    pooled = _sliding_max(rowmax, block_size, axis=1)          # (H_out, W_out)
    bm = 1.0 - pooled[:H, :W]                                  # nearest resize == truncate
    mask_ref[...] = bm[None, :, :].astype(mask_ref.dtype)


def _apply_mask_kernel(mask_ref, x_ref, o_ref):
    # mask_ref: (1, 1, HW); x_ref / o_ref: (1, Ct, HW)  -- lane-dense last dim.
    o_ref[...] = (x_ref[...] * mask_ref[...]).astype(o_ref.dtype)


def _choose_channel_tile(C, HW, itemsize, target_bytes=2 * 1024 * 1024):
    """Largest channel tile whose x block stays ~<= target_bytes.

    Candidates are multiple-of-8 divisors of C (tiling-friendly sublane dim)
    plus C itself (block dim == full array dim is always legal).
    """
    cands = [d for d in range(8, C + 1, 8) if C % d == 0] + [C]
    fitting = [d for d in cands if d * HW * itemsize <= target_bytes]
    return max(fitting) if fitting else min(cands)


def dropblock_lif(x, saliency, block_size=10, threshold=0.3):
    """Pallas TPU implementation of DropBlockLIF.forward(x, saliency)."""
    if saliency.ndim == 2:
        saliency = saliency[None]
    if x.ndim == 3:
        x = x[None]
    N, C, H, W = x.shape
    B = saliency.shape[0]
    if B not in (1, N):
        raise ValueError(f"saliency batch {B} must be 1 or equal x batch {N}")
    out_dtype = x.dtype

    # ---- 1. block mask from saliency (tiny; one grid step per map) --------
    p = block_size // 2
    pad_val = jnp.float32(threshold) + 1.0   # thresholds to 0 (== -inf pad of mask)
    sal_p = jnp.pad(saliency.astype(jnp.float32), ((0, 0), (p, p), (p, p)),
                    constant_values=pad_val)
    Hp, Wp = H + 2 * p, W + 2 * p

    mask = pl.pallas_call(
        functools.partial(_block_mask_kernel, block_size=block_size,
                          threshold=float(threshold), H=H, W=W),
        out_shape=jax.ShapeDtypeStruct((B, H, W), out_dtype),
        grid_spec=pltpu.PrefetchScalarGridSpec(
            num_scalar_prefetch=0,
            grid=(B,),
            in_specs=[pl.BlockSpec((1, Hp, Wp), lambda b: (b, 0, 0))],
            out_specs=pl.BlockSpec((1, H, W), lambda b: (b, 0, 0))),
        compiler_params=pltpu.CompilerParams(
            dimension_semantics=("parallel",)),
    )(sal_p)

    # ---- 2. lane-dense masked multiply (the HBM-bound hot path) -----------
    HW = H * W
    x_flat = x.reshape(N, C, HW)            # free, contiguous reshape
    mask_flat = mask.reshape(B, 1, HW)      # free, contiguous reshape

    ct = _choose_channel_tile(C, HW, np.dtype(out_dtype).itemsize)
    mask_map = (lambda n, c: (n, 0, 0)) if B > 1 else (lambda n, c: (0, 0, 0))

    out_flat = pl.pallas_call(
        _apply_mask_kernel,
        out_shape=jax.ShapeDtypeStruct((N, C, HW), out_dtype),
        grid_spec=pltpu.PrefetchScalarGridSpec(
            num_scalar_prefetch=0,
            grid=(N, C // ct),
            in_specs=[pl.BlockSpec((1, 1, HW), mask_map),
                      pl.BlockSpec((1, ct, HW), lambda n, c: (n, c, 0))],
            out_specs=pl.BlockSpec((1, ct, HW), lambda n, c: (n, c, 0))),
        compiler_params=pltpu.CompilerParams(
            dimension_semantics=("parallel", "parallel"),
            vmem_limit_bytes=32 * 1024 * 1024),
    )(mask_flat, x_flat)

    return out_flat.reshape(N, C, H, W)


# ----------------------------- pure-JAX reference ---------------------------
def _reference_mask(saliency, H, W, block_size, threshold):
    p = block_size // 2
    m = (saliency < threshold).astype(jnp.float32)
    pooled = lax.reduce_window(
        m, -jnp.inf, lax.max,
        window_dimensions=(1, block_size, block_size),
        window_strides=(1, 1, 1),
        padding=((0, 0), (p, p), (p, p)))
    return (1.0 - pooled)[:, :H, :W]


def _reference(x, saliency, block_size=10, threshold=0.3):
    if saliency.ndim == 2:
        saliency = saliency[None]
    if x.ndim == 3:
        x = x[None]
    bm = _reference_mask(saliency, x.shape[2], x.shape[3], block_size, threshold)
    return x * bm.astype(x.dtype)[:, None, :, :]


if __name__ == "__main__":
    key = jax.random.PRNGKey(0)
    kx, ks = jax.random.split(key)

    N, C, H, W = 2, 4, 16, 16
    block_size, threshold = 10, 0.3

    x = jax.random.normal(kx, (N, C, H, W), dtype=jnp.float32)
    saliency = jax.random.uniform(ks, (N, H, W), dtype=jnp.float32)

    out = jax.block_until_ready(
        dropblock_lif(x, saliency, block_size=block_size, threshold=threshold))
    ref = _reference(x, saliency, block_size=block_size, threshold=threshold)
    assert out.shape == (N, C, H, W), out.shape
    assert out.dtype == x.dtype, out.dtype
    np.testing.assert_allclose(np.asarray(out), np.asarray(ref),
                               rtol=1e-6, atol=1e-6)

    # dtype preservation: bf16 in -> bf16 out; mask is exactly {0,1} so exact.
    x_bf16 = x.astype(jnp.bfloat16)
    out_bf16 = jax.block_until_ready(
        dropblock_lif(x_bf16, saliency, block_size=block_size, threshold=threshold))
    ref_bf16 = _reference(x_bf16, saliency, block_size=block_size, threshold=threshold)
    assert out_bf16.dtype == jnp.bfloat16, out_bf16.dtype
    np.testing.assert_array_equal(np.asarray(out_bf16).astype(np.float32),
                                  np.asarray(ref_bf16).astype(np.float32))

    print("KERNEL_OK")
</pallas_src>

<mosaic_0001>
module attributes {stable_mosaic.version = 11 : i64} {
  func.func @_block_mask_kernel(%arg0: i32, %arg1: memref<1x26x26xf32, #tpu.memory_space<vmem>>, %arg2: memref<1x16x16xf32, #tpu.memory_space<vmem>>) attributes {dimension_semantics = [#tpu.dimension_semantics<parallel>], iteration_bounds = array<i64: 2>, scalar_prefetch = 0 : i64, scratch_operands = 0 : i64, tpu.core_type = #tpu.core_type<tc>, window_params = [{transform_indices = @transform_0, window_bounds = array<i64: 1, 26, 26>}, {transform_indices = @transform_1, window_bounds = array<i64: 1, 16, 16>}]} {
    %c0 = arith.constant 0 : index
    %c0_0 = arith.constant 0 : index
    %c0_1 = arith.constant 0 : index
    %0 = vector.load %arg1[%c0, %c0_0, %c0_1] : memref<1x26x26xf32, #tpu.memory_space<vmem>>, vector<1x26x26xf32>
    %1 = vector.shape_cast %0 : vector<1x26x26xf32> to vector<26x26xf32>
    %cst = arith.constant 3.000000e-01 : f32
    %2 = vector.broadcast %cst : f32 to vector<26x26xf32>
    %3 = arith.cmpf olt, %1, %2 : vector<26x26xf32>
    %4 = arith.extui %3 : vector<26x26xi1> to vector<26x26xi32>
    %5 = arith.sitofp %4 : vector<26x26xi32> to vector<26x26xf32>
    %6 = vector.extract_strided_slice %5 {offsets = [0, 0], sizes = [25, 26], strides = [1, 1]} : vector<26x26xf32> to vector<25x26xf32>
    %7 = vector.extract_strided_slice %5 {offsets = [1, 0], sizes = [25, 26], strides = [1, 1]} : vector<26x26xf32> to vector<25x26xf32>
    %8 = arith.maximumf %6, %7 : vector<25x26xf32>
    %9 = vector.extract_strided_slice %8 {offsets = [0, 0], sizes = [23, 26], strides = [1, 1]} : vector<25x26xf32> to vector<23x26xf32>
    %10 = vector.extract_strided_slice %8 {offsets = [2, 0], sizes = [23, 26], strides = [1, 1]} : vector<25x26xf32> to vector<23x26xf32>
    %11 = arith.maximumf %9, %10 : vector<23x26xf32>
    %12 = vector.extract_strided_slice %11 {offsets = [0, 0], sizes = [19, 26], strides = [1, 1]} : vector<23x26xf32> to vector<19x26xf32>
    %13 = vector.extract_strided_slice %11 {offsets = [4, 0], sizes = [19, 26], strides = [1, 1]} : vector<23x26xf32> to vector<19x26xf32>
    %14 = arith.maximumf %12, %13 : vector<19x26xf32>
    %15 = vector.extract_strided_slice %14 {offsets = [0, 0], sizes = [17, 26], strides = [1, 1]} : vector<19x26xf32> to vector<17x26xf32>
    %16 = vector.extract_strided_slice %14 {offsets = [2, 0], sizes = [17, 26], strides = [1, 1]} : vector<19x26xf32> to vector<17x26xf32>
    %17 = arith.maximumf %15, %16 : vector<17x26xf32>
    %18 = vector.extract_strided_slice %17 {offsets = [0, 0], sizes = [17, 25], strides = [1, 1]} : vector<17x26xf32> to vector<17x25xf32>
    %19 = vector.extract_strided_slice %17 {offsets = [0, 1], sizes = [17, 25], strides = [1, 1]} : vector<17x26xf32> to vector<17x25xf32>
    %20 = arith.maximumf %18, %19 : vector<17x25xf32>
    %21 = vector.extract_strided_slice %20 {offsets = [0, 0], sizes = [17, 23], strides = [1, 1]} : vector<17x25xf32> to vector<17x23xf32>
    %22 = vector.extract_strided_slice %20 {offsets = [0, 2], sizes = [17, 23], strides = [1, 1]} : vector<17x25xf32> to vector<17x23xf32>
    %23 = arith.maximumf %21, %22 : vector<17x23xf32>
    %24 = vector.extract_strided_slice %23 {offsets = [0, 0], sizes = [17, 19], strides = [1, 1]} : vector<17x23xf32> to vector<17x19xf32>
    %25 = vector.extract_strided_slice %23 {offsets = [0, 4], sizes = [17, 19], strides = [1, 1]} : vector<17x23xf32> to vector<17x19xf32>
    %26 = arith.maximumf %24, %25 : vector<17x19xf32>
    %27 = vector.extract_strided_slice %26 {offsets = [0, 0], sizes = [17, 17], strides = [1, 1]} : vector<17x19xf32> to vector<17x17xf32>
    %28 = vector.extract_strided_slice %26 {offsets = [0, 2], sizes = [17, 17], strides = [1, 1]} : vector<17x19xf32> to vector<17x17xf32>
    %29 = arith.maximumf %27, %28 : vector<17x17xf32>
    %30 = vector.extract_strided_slice %29 {offsets = [0, 0], sizes = [16, 16], strides = [1, 1]} : vector<17x17xf32> to vector<16x16xf32>
    %cst_2 = arith.constant 1.000000e+00 : f32
    %31 = vector.broadcast %cst_2 : f32 to vector<16x16xf32>
    %32 = arith.subf %31, %30 : vector<16x16xf32>
    %33 = vector.shape_cast %32 : vector<16x16xf32> to vector<1x16x16xf32>
    %c0_3 = arith.constant 0 : index
    %c0_4 = arith.constant 0 : index
    %c0_5 = arith.constant 0 : index
    %34 = vector.load %arg2[%c0_3, %c0_4, %c0_5] : memref<1x16x16xf32, #tpu.memory_space<vmem>>, vector<1x16x16xf32>
    tpu.vector_store %arg2[%c0_3, %c0_4, %c0_5], %33 {strides = array<i32>} : memref<1x16x16xf32, #tpu.memory_space<vmem>>, vector<1x16x16xf32>,
    return
  }
  func.func @transform_0(%arg0: i32) -> (i32, i32, i32) {
    %c0_i32 = arith.constant 0 : i32
    %c0_i32_0 = arith.constant 0 : i32
    %c0_i32_1 = arith.constant 0 : i32
    return %arg0, %c0_i32, %c0_i32_0 : i32, i32, i32
  }
  func.func @transform_1(%arg0: i32) -> (i32, i32, i32) {
    %c0_i32 = arith.constant 0 : i32
    %c0_i32_0 = arith.constant 0 : i32
    %c0_i32_1 = arith.constant 0 : i32
    return %arg0, %c0_i32, %c0_i32_0 : i32, i32, i32
  }
}

</mosaic_0001>

<llo_original>
// kernel: tpu_custom_call.1
$region0: #{tpu_custom_call.1}
  #allocation0 [shape = 'u32[]', space=smem, size = 0x4, offset = 0x4, fixed_abs, tag = 'smem constant byte address 0x4 - core index']
  #allocation1 [shape = 'u32[144,128]{1,0:T(1,128)}', space=vmem, size = 0x12000, scoped, tag = 'internal scratch']
  %s0 = inlined_call_operand.vmem [shape: f32[2,26,26], index: 0, kind: input, shape index: {}]
  %s1 = inlined_call_operand.hbm [shape: f32[2,16,16], index: 1, kind: output, shape index: {}]
  %s2 = sld [smem:[#allocation0]]
  $region37: #{tpu_custom_call.1} parent=0
    _
  %s4 = ssub.s32 1, %s2
  %s5 = scalar_select 0, %s4, %s2
  $region1: #{tpu_custom_call.1} parent=0
    #allocation2 [shape = 'u8[16384]{0}', space=vmem, size = 0x4000, scoped, tag = 'output window, operand 0']
    #allocation3 [shape = 's32[2]{0}', space=sflag, size = 0x8, scoped, tag = 'scoped memory for tpu_custom_call.1']
    %6 = vsyncpa [#allocation3], 0
    %s7 = scalar_lea.sflag [#allocation3], 1
    %8 = vsyncpa %s7, 0
    loop: start=0, step=1, limit=4
    $region2: #{tpu_custom_call.1} parent=1 // loop_pre_header
      _
    $region3: #{tpu_custom_call.1} parent=1 // loop_header
      %s10 = sphi 0, %s14
      %p11 = scmp.ge.s32.totalorder %s10, 4
      %s20 = sphi 0, %s22
      %s23 = sphi 0, %s20
      %s24 = sphi 0, %s23
      %s40 = sphi 0, %s24
      %s46 = sphi 0, %s48
      %s49 = sphi 0, %s46
      %s50 = sphi 0, %s49
      %s66 = sphi 0, %s50
    $region4: #{tpu_custom_call.1} parent=1 // loop_header_branch
      %13 = sbr.rel (%p11) target = $region8
    $region5: #{tpu_custom_call.1} parent=1 // loop_body
      %s15 = ssub.s32 %s10, 1
      %s16 = ssub.s32 %s10, 2
      %s17 = sadd.s32 %s10, 1
      %s18 = ssub.s32 %s10, %s17
      %p19 = scmp.eq.s32.totalorder %s18, 0
      %s21 = sadd.s32 %s20, 1
      %s22 = scalar_select %p19, %s20, %s21
      %p25 = pneg %p19
      %p26 = scmp.eq.s32.totalorder %s10, 1
      %p27 = por %p25, %p26
      %p28 = scmp.ne.s32.totalorder %s20, %s23
      %p29 = scmp.eq.s32.totalorder %s10, 0
      %p30 = por %p28, %p29
      %p31 = scmp.ne.s32.totalorder %s20, %s23
      %p32 = scmp.eq.s32.totalorder %s15, 1
      %p33 = por %p31, %p32
      %p34 = scmp.ne.s32.totalorder %s23, %s24
      %p35 = scmp.eq.s32.totalorder %s15, 0
      %p36 = por %p34, %p35
      %p37 = scmp.ne.s32.totalorder %s23, %s24
      %p38 = scmp.eq.s32.totalorder %s16, 1
      %p39 = por %p37, %p38
      %p41 = scmp.ne.s32.totalorder %s24, %s40
      %p42 = scmp.eq.s32.totalorder %s16, 0
      %p43 = por %p41, %p42
      %s44 = ssub.s32 %s10, %s17
      %p45 = scmp.eq.s32.totalorder %s44, 0
      %s47 = sadd.s32 %s46, 1
      %s48 = scalar_select %p45, %s46, %s47
      %p51 = pneg %p45
      %p52 = scmp.eq.s32.totalorder %s10, 1
      %p53 = por %p51, %p52
      %p54 = scmp.ne.s32.totalorder %s46, %s49
      %p55 = scmp.eq.s32.totalorder %s10, 0
      %p56 = por %p54, %p55
      %p57 = scmp.ne.s32.totalorder %s46, %s49
      %p58 = scmp.eq.s32.totalorder %s15, 1
      %p59 = por %p57, %p58
      %p60 = scmp.ne.s32.totalorder %s49, %s50
      %p61 = scmp.eq.s32.totalorder %s15, 0
      %p62 = por %p60, %p61
      %p63 = scmp.ne.s32.totalorder %s49, %s50
      %p64 = scmp.eq.s32.totalorder %s16, 1
      %p65 = por %p63, %p64
      %p67 = scmp.ne.s32.totalorder %s50, %s66
      %p68 = scmp.eq.s32.totalorder %s16, 0
      %p69 = por %p67, %p68
      %p70 = scmp.le.s32.totalorder 1, %s10
      %p71 = scmp.lt.s32.totalorder %s10, 3
      %p72 = pnand %p70, %p71
      %p73 = pneg %p72
      // Predicated region
      $region9: #{tpu_custom_call.1} parent=5 // pred_check
        _
      $region10: #{tpu_custom_call.1} parent=5 // pred_check_branch
        %75 = sbr.rel (%p72) target = $region12
      $region11: #{tpu_custom_call.1} parent=5 // pred_region
        %s76 = ssub.s32 %s10, 1
      $region12: #{tpu_custom_call.1} parent=5 // pred_fallthru
        _
      %p77 = scmp.lt.s32.totalorder %s10, 2
      // Predicated region
      $region13: #{tpu_custom_call.1} parent=5 // pred_check
        %p78 = pneg %p77
      $region14: #{tpu_custom_call.1} parent=5 // pred_check_branch
        %80 = sbr.rel (%p78) target = $region16
      $region15: #{tpu_custom_call.1} parent=5 // pred_region
        // Predicated region
        $region17: #{tpu_custom_call.1} parent=15 // pred_check
          %p81 = pneg %p30
        $region18: #{tpu_custom_call.1} parent=15 // pred_check_branch
          %83 = sbr.rel (%p81) target = $region20
        $region19: #{tpu_custom_call.1} parent=15 // pred_region
          %p84 = scmp.lt.s32.totalorder %s10, 1
          %s85 = scalar_select %p84, %s10, 1
          %s86 = smul.addr %s85, 4
          %s87 = smul.addr %s86, 8
          %s88 = scalar_lea.vmem %s0, %s87
        $region20: #{tpu_custom_call.1} parent=15 // pred_fallthru
          _
      $region16: #{tpu_custom_call.1} parent=5 // pred_fallthru
        _
      %p89 = scmp.le.s32.totalorder 1, %s10
      %p90 = scmp.lt.s32.totalorder %s10, 3
      %p91 = pnand %p89, %p90
      %p92 = pneg %p91
      // Predicated region
      $region21: #{tpu_custom_call.1} parent=5 // pred_check
        _
      $region22: #{tpu_custom_call.1} parent=5 // pred_check_branch
        %94 = sbr.rel (%p91) target = $region24
      $region23: #{tpu_custom_call.1} parent=5 // pred_region
        %s95 = ssub.s32 %s10, 1
        %p96 = scmp.lt.s32.totalorder %s15, 1
        %s97 = scalar_select %p96, %s15, 1
        %s98 = smul.addr %s97, 4
        %s99 = smul.addr %s98, 8
        %s100 = scalar_lea.vmem %s0, %s99
        %p101 = pneg %p36
        %p102 = pneg %p33
        %p103 = pneg %p62
        %p104 = pneg %p59
        %s105 = sand.u32 %s49, 1
        %s106 = scalar_lea.sflag [#allocation3], %s105
        %s107 = sand.u32 %s49, 1
        %s108 = smul.addr %s107, 16
        %s109 = scalar_lea.vmem [#allocation2], %s108
        %p110 = scmp.lt.s32.totalorder %s15, 1
        %s111 = scalar_select %p110, %s15, 1
        %s112 = smul.addr %s111, 4
        %s113 = smul.addr %s112, 8
        %s114 = scalar_lea.vmem %s0, %s113
        %v115 = vld [vmem:[%s114] sm:$0xff]
        %v116 = vld [vmem:[%s114 + $0x8] sm:$0xff]
        %v117 = vld [vmem:[%s114 + $0x10] sm:$0xff]
        %v118 = vld [vmem:[%s114 + $0x18] sm:$0x3]
        %vm119 = vcmp.lt.f32.partialorder %v115, 0.3
        %vm120 = vcmp.lt.f32.partialorder %v116, 0.3
        %vm121 = vcmp.lt.f32.partialorder %v117, 0.3
        %vm122 = vcmp.lt.f32.partialorder %v118, 0.3
        %v123 = vsel %vm119, 1, 0
        %v124 = vsel %vm120, 1, 0
        %v125 = vsel %vm121, 1, 0
        %v126 = vsel %vm122, 1, 0
        %v127 = vcvt.s32.f32 %v123
        %v128 = vcvt.s32.f32 %v124
        %v129 = vcvt.s32.f32 %v125
        %v130 = vcvt.s32.f32 %v126
        %vm135 = vcmask 1046528
        %v136 = vrot.slane %v127, 1
        %v137 = vrot.slane %v128, 1
        %v138 = vsel %vm135, %v136, %v137
        %v139 = vrot.slane %v129, 1
        %v140 = vsel %vm135, %v137, %v139
        %v141 = vrot.slane %v130, 1
        %v142 = vsel %vm135, %v139, %v141
        %v147 = vmax.f32 %v127, %v138
        %v148 = vmax.f32 %v128, %v140
        %v149 = vmax.f32 %v129, %v142
        %v150 = vmax.f32 %v130, %v141
        %vm155 = vcmask 1045504
        %v156 = vrot.slane %v147, 2
        %v157 = vrot.slane %v148, 2
        %v158 = vsel %vm155, %v156, %v157
        %v159 = vrot.slane %v149, 2
        %v160 = vsel %vm155, %v157, %v159
        %v161 = vrot.slane %v150, 2
        %v162 = vsel %vm155, %v159, %v161
        %v166 = vmax.f32 %v147, %v158
        %v167 = vmax.f32 %v148, %v160
        %v168 = vmax.f32 %v149, %v162
        %vm172 = vcmask 1043456
        %v173 = vrot.slane %v166, 4
        %v174 = vrot.slane %v167, 4
        %v175 = vsel %vm172, %v173, %v174
        %v176 = vrot.slane %v168, 4
        %v177 = vsel %vm172, %v174, %v176
        %v181 = vmax.f32 %v166, %v175
        %v182 = vmax.f32 %v167, %v177
        %v183 = vmax.f32 %v168, %v176
        %v187 = vrot.slane %v181, 2
        %v188 = vrot.slane %v182, 2
        %v189 = vsel %vm155, %v187, %v188
        %v190 = vrot.slane %v183, 2
        %v191 = vsel %vm155, %v188, %v190
        %v194 = vmax.f32 %v181, %v189
        %v195 = vmax.f32 %v182, %v191
        %198 = vrot.lane.b32.xlu0 %v194, 127
        %v199 = vpop.permute.xlu0 %198
        %200 = vrot.lane.b32.xlu0 %v195, 127
        %v201 = vpop.permute.xlu0 %200
        %v204 = vmax.f32 %v194, %v199
        %v205 = vmax.f32 %v195, %v201
        %208 = vrot.lane.b32.xlu0 %v204, 126
        %v209 = vpop.permute.xlu0 %208
        %210 = vrot.lane.b32.xlu0 %v205, 126
        %v211 = vpop.permute.xlu0 %210
        %v214 = vmax.f32 %v204, %v209
        %v215 = vmax.f32 %v205, %v211
        %218 = vrot.lane.b32.xlu0 %v214, 124
        %v219 = vpop.permute.xlu0 %218
        %220 = vrot.lane.b32.xlu0 %v215, 124
        %v221 = vpop.permute.xlu0 %220
        %v224 = vmax.f32 %v214, %v219
        %v225 = vmax.f32 %v215, %v221
        %228 = vrot.lane.b32.xlu0 %v224, 126
        %v229 = vpop.permute.xlu0 %228
        %230 = vrot.lane.b32.xlu0 %v225, 126
        %v231 = vpop.permute.xlu0 %230
        %v234 = vmax.f32 %v224, %v229
        %v235 = vmax.f32 %v225, %v231
        %v236 = vsub.f32 1.0, %v234
        %v237 = vsub.f32 1.0, %v235
        %vm238 = vcmask 130048
        %239 = vst.msk [vmem:[%s109] sm:$0xff] %vm238, %v236
        %240 = vst.msk [vmem:[%s109 + $0x8] sm:$0xff] %vm238, %v237
        %s241 = sand.u32 %s49, 1
        %s242 = scalar_lea.sflag [#allocation3], %s241
        %s243 = sand.u32 %s49, 1
        %s244 = smul.addr %s243, 16
        %s245 = scalar_lea.vmem [#allocation2], %s244
        // Predicated region
        $region25: #{tpu_custom_call.1} parent=23 // pred_check
          %p246 = pneg %p59
        $region26: #{tpu_custom_call.1} parent=23 // pred_check_branch
          %248 = sbr.rel (%p246) target = $region28
        $region27: #{tpu_custom_call.1} parent=23 // pred_region
          %s250 = ssub.s32 256, 256
          %251 = vsyncadd %s242, %s250
          %s252 = smul.addr %s15, 2
          %s253 = smul.addr %s252, 128
          %s254 = scalar_lea.hbm %s1, %s253
          %s255 = sshll.u32 %s245, 4
          %s256 = int_to_ptr.vmem [resolvable:$true] %s255
          %261 = dma.vmem_to_hbm [thread:$0]  %s256, 256, %s254, %s242, 128, 128, 8
        $region28: #{tpu_custom_call.1} parent=23 // pred_fallthru
          _
      $region24: #{tpu_custom_call.1} parent=5 // pred_fallthru
        _
      %p262 = scmp.le.s32.totalorder 2, %s10
      // Predicated region
      $region29: #{tpu_custom_call.1} parent=5 // pred_check
        %p263 = pneg %p262
      $region30: #{tpu_custom_call.1} parent=5 // pred_check_branch
        %265 = sbr.rel (%p263) target = $region32
      $region31: #{tpu_custom_call.1} parent=5 // pred_region
        %s266 = ssub.s32 %s10, 2
        // Predicated region
        $region33: #{tpu_custom_call.1} parent=31 // pred_check
          %p267 = pneg %p65
        $region34: #{tpu_custom_call.1} parent=31 // pred_check_branch
          %269 = sbr.rel (%p267) target = $region36
        $region35: #{tpu_custom_call.1} parent=31 // pred_region
          %s270 = sand.u32 %s50, 1
          %s271 = scalar_lea.sflag [#allocation3], %s270
          %s272 = sand.u32 %s50, 1
          %s273 = smul.addr %s272, 16
          %s274 = scalar_lea.vmem [#allocation2], %s273
          %275 = dma.done %s271, 256
        $region36: #{tpu_custom_call.1} parent=31 // pred_fallthru
          _
      $region32: #{tpu_custom_call.1} parent=5 // pred_fallthru
        _
    $region6: #{tpu_custom_call.1} parent=1 // loop_footer
      %s14 = sadd.s32 1, %s10
    $region7: #{tpu_custom_call.1} parent=1 // loop_footer_branch
      %9 = sbr.rel target = $region3
    $region8: #{tpu_custom_call.1} parent=1 // loop_exit
      _
    %276 = vsyncpa [#allocation3], 1
    %s277 = scalar_lea.sflag [#allocation3], 1
    %278 = vsyncpa %s277, 1

</llo_original>
